<compile_context>
chip_gen: v5e
topology: v5e:2x2
jax: 0.10.0
libtpu: 0.0.40
codegen_flags: <defaults>
</compile_context>

<pallas_src>
import functools

import jax
import jax.numpy as jnp
from jax import lax
from jax.experimental import pallas as pl
from jax.experimental.pallas import tpu as pltpu


def _flash_kernel(q_ref, k_ref, v_ref, x_ref, o_ref, m_sc, acc_sc, *, c):
    """One (batch, query-tile, key-tile) step of the online-softmax attention.

    q_ref : (1, C8+1, TQ) bf16   projected queries + ones row
    k_ref : (1, C8+1, TK) bf16   projected keys + mask row (0 / -1e30)
    v_ref : (1, C +1, TK) bf16   gamma-scaled projected values + ones row
    x_ref : (1, C   , TQ) f32    residual input tile
    o_ref : (1, C   , TQ)        output tile
    m_sc  : (1, TQ) f32          running max
    acc_sc: (C+1, TQ) f32        running numerator; row C is the denominator
    """
    ki = pl.program_id(2)
    nk = pl.num_programs(2)

    # ---- init once per (batch, query-tile).
    @pl.when(ki == 0)
    def _():
        m_sc[...] = jnp.full(m_sc.shape, -jnp.inf, dtype=jnp.float32)
        acc_sc[...] = jnp.zeros(acc_sc.shape, dtype=jnp.float32)

    # ---- scores s[j, i] = sum_c k[c, j] * q[c, i]  (== energy[i, j]).
    # The extra mask row of k (paired with q's ones row) injects -1e30 into
    # padded key columns directly on the MXU -- no per-step select needed.
    s = lax.dot_general(k_ref[0], q_ref[0], (((0,), (0,)), ((), ())),
                        preferred_element_type=jnp.float32)            # (TK, TQ)

    # ---- online softmax over keys (axis 0 = sublane axis).
    m_prev = m_sc[...]                                                  # (1, TQ)
    m_new = jnp.maximum(m_prev, jnp.max(s, axis=0, keepdims=True))
    alpha = jnp.exp(m_prev - m_new)                                     # (1, TQ)
    p = jnp.exp(s - m_new).astype(jnp.bfloat16)                         # (TK, TQ)

    # Single matmul yields both the numerator (rows 0..C-1) and the running
    # denominator (row C, from v's appended ones row).
    acc_sc[...] = alpha * acc_sc[...] + jnp.dot(
        v_ref[0], p, preferred_element_type=jnp.float32)                # (C+1, TQ)
    m_sc[...] = m_new

    # ---- finalize: normalize, residual add, lane-dense store.
    @pl.when(ki == nk - 1)
    def _():
        inv_l = pl.reciprocal(acc_sc[c:c + 1, :], approx=True)          # (1, TQ)
        o_ref[0] = (acc_sc[:c, :] * inv_l + x_ref[0]).astype(o_ref.dtype)


def self_attention_forward(x_nchw, wq, bq, wk, bk, wv, bv, gamma):
    """x_nchw: (B, C, W, H) float32. Returns (B, C, W, H). Matches the PyTorch module."""
    B, C, W, H = x_nchw.shape
    N = W * H
    C8 = wq.shape[0]

    # ---- spatial padding to a lane-dense multiple of 128 and tile selection.
    n_pad = ((N + 127) // 128) * 128
    pad = n_pad - N

    def _pick(t):
        while n_pad % t != 0:
            t //= 2
        return max(t, 128)

    tq = _pick(512)          # large query tile: halves KV re-read traffic
    tk = _pick(512)

    # v7x megacore: keep the parallel extent (B * Nq) >= 2 and even when cheap.
    def _units(t):
        return B * (n_pad // t)
    while tq > 128 and (_units(tq) < 2 or (_units(tq) % 2 == 1 and _units(tq) < 8)):
        tq //= 2

    nq_tiles = n_pad // tq
    nk_tiles = n_pad // tk

    # ---- flatten + pad residual input.
    x = x_nchw.reshape(B, C, N).astype(jnp.float32)
    xp = jnp.pad(x, ((0, 0), (0, 0), (0, pad))) if pad else x

    # ---- hoisted projections (once per call, plain XLA).  gamma is folded
    # into the value projection, so the kernel never sees it.
    g = gamma[0]
    q = jnp.einsum("oc,bcn->bon", wq, xp) + bq[None, :, None]            # (B, C8, Np)
    k = jnp.einsum("oc,bcn->bon", wk, xp) + bk[None, :, None]            # (B, C8, Np)
    v = jnp.einsum("oc,bcn->bon", g * wv, xp) + (g * bv)[None, :, None]  # (B, C , Np)

    # Extra rows: q <- ones, k <- key-padding mask, v <- ones (denominator).
    ones_row = jnp.ones((B, 1, n_pad), jnp.float32)
    col = lax.broadcasted_iota(jnp.int32, (B, 1, n_pad), 2)
    mask_row = jnp.where(col < N, jnp.float32(0.0), jnp.float32(-1e30))

    q_b = jnp.concatenate([q, ones_row], axis=1).astype(jnp.bfloat16)    # (B, C8+1, Np)
    k_b = jnp.concatenate([k, mask_row], axis=1).astype(jnp.bfloat16)    # (B, C8+1, Np)
    v_b = jnp.concatenate([v, ones_row], axis=1).astype(jnp.bfloat16)    # (B, C +1, Np)

    cm = C8 + 1
    cv = C + 1

    kernel = functools.partial(_flash_kernel, c=C)

    # ---- VMEM budget: double-buffered bf16 q/k/v tiles, f32 x/out tiles,
    # scratch, and s/p temporaries.  Cap at 48 MiB (v7x headroom).
    est = (2 * cm * tq * 2 + 2 * cm * tk * 2 + 2 * cv * tk * 2
           + 2 * C * tq * 4 + 2 * C * tq * 4
           + cv * tq * 4 + 8 * tq * 4
           + 4 * tk * tq * 4)
    vmem_limit = int(min(max(2 * est, 32 * 1024 * 1024), 48 * 1024 * 1024))

    out = pl.pallas_call(
        kernel,
        out_shape=jax.ShapeDtypeStruct((B, C, n_pad), x_nchw.dtype),
        grid_spec=pltpu.PrefetchScalarGridSpec(
            num_scalar_prefetch=0,
            grid=(B, nq_tiles, nk_tiles),
            in_specs=[
                pl.BlockSpec((1, cm, tq), lambda b, qi, ki: (b, 0, qi)),  # q tile
                pl.BlockSpec((1, cm, tk), lambda b, qi, ki: (b, 0, ki)),  # k tile
                pl.BlockSpec((1, cv, tk), lambda b, qi, ki: (b, 0, ki)),  # v tile
                pl.BlockSpec((1, C, tq), lambda b, qi, ki: (b, 0, qi)),   # x residual
            ],
            out_specs=pl.BlockSpec((1, C, tq), lambda b, qi, ki: (b, 0, qi)),
            scratch_shapes=[
                pltpu.VMEM((1, tq), jnp.float32),    # m (running max)
                pltpu.VMEM((cv, tq), jnp.float32),   # acc (+ denominator row)
            ],
        ),
        compiler_params=pltpu.CompilerParams(
            dimension_semantics=("parallel", "parallel", "arbitrary"),
            vmem_limit_bytes=vmem_limit,
        ),
    )(q_b, k_b, v_b, xp)

    return out[:, :, :N].reshape(B, C, W, H)


if __name__ == "__main__":
    # Small shapes consistent with the module.
    B, C, W, H = 2, 16, 8, 8
    C8 = C // 8

    key = jax.random.PRNGKey(0)
    kx, kqw, kbq, kkw, kbk, kvw, kbv = jax.random.split(key, 7)

    x = jax.random.normal(kx, (B, C, W, H), dtype=jnp.float32)

    # Deterministic synthetic parameters (shapes follow nn.Conv1d(kernel_size=1)).
    scale = 0.1
    wq = scale * jax.random.normal(kqw, (C8, C), dtype=jnp.float32)
    bq = scale * jax.random.normal(kbq, (C8,), dtype=jnp.float32)
    wk = scale * jax.random.normal(kkw, (C8, C), dtype=jnp.float32)
    bk = scale * jax.random.normal(kbk, (C8,), dtype=jnp.float32)
    wv = scale * jax.random.normal(kvw, (C, C), dtype=jnp.float32)
    bv = scale * jax.random.normal(kbv, (C,), dtype=jnp.float32)
    # gamma is zero-initialized in the PyTorch module; use a nonzero value so
    # the attention path actually contributes (set to 0.0 to match init exactly).
    gamma = jnp.array([0.5], dtype=jnp.float32)

    out = self_attention_forward(x, wq, bq, wk, bk, wv, bv, gamma)
    jax.block_until_ready(out)

    # Pure-JAX f32 reference (kernel uses bf16 MXU operands with f32 accumulation).
    xf = x.reshape(B, C, W * H)
    q_r = jnp.einsum("oc,bcn->bon", wq, xf) + bq[None, :, None]
    k_r = jnp.einsum("oc,bcn->bon", wk, xf) + bk[None, :, None]
    v_r = jnp.einsum("oc,bcn->bon", wv, xf) + bv[None, :, None]
    energy = jnp.einsum("bci,bcj->bij", q_r, k_r)
    att = jax.nn.softmax(energy, axis=-1)
    out_r = jnp.einsum("bcj,bij->bci", v_r, att)
    out_r = (gamma[0] * out_r + xf).reshape(B, C, W, H)

    assert jnp.allclose(out, out_r, atol=1e-2, rtol=1e-2), "mismatch vs reference"
    print("KERNEL_OK")
</pallas_src>

<mosaic_0001>
module attributes {stable_mosaic.version = 11 : i64} {
  func.func @_flash_kernel(%arg0: i32, %arg1: i32, %arg2: i32, %arg3: memref<1x3x128xbf16, #tpu.memory_space<vmem>>, %arg4: memref<1x3x128xbf16, #tpu.memory_space<vmem>>, %arg5: memref<1x17x128xbf16, #tpu.memory_space<vmem>>, %arg6: memref<1x16x128xf32, #tpu.memory_space<vmem>>, %arg7: memref<1x16x128xf32, #tpu.memory_space<vmem>>, %arg8: memref<1x128xf32, #tpu.memory_space<vmem>>, %arg9: memref<17x128xf32, #tpu.memory_space<vmem>>) attributes {dimension_semantics = [#tpu.dimension_semantics<parallel>, #tpu.dimension_semantics<parallel>, #tpu.dimension_semantics<arbitrary>], iteration_bounds = array<i64: 2, 1, 1>, scalar_prefetch = 0 : i64, scratch_operands = 2 : i64, tpu.core_type = #tpu.core_type<tc>, window_params = [{transform_indices = @transform_0, window_bounds = array<i64: 1, 3, 128>}, {transform_indices = @transform_1, window_bounds = array<i64: 1, 3, 128>}, {transform_indices = @transform_2, window_bounds = array<i64: 1, 17, 128>}, {transform_indices = @transform_3, window_bounds = array<i64: 1, 16, 128>}, {transform_indices = @transform_4, window_bounds = array<i64: 1, 16, 128>}]} {
    %c0_i32 = arith.constant 0 : i32
    %0 = arith.cmpi eq, %arg2, %c0_i32 : i32
    %1 = arith.extui %0 : i1 to i32
    %c0_i32_0 = arith.constant 0 : i32
    %2 = arith.cmpi ne, %1, %c0_i32_0 : i32
    scf.if %2 {
      %cst_21 = arith.constant 0xFF800000 : f32
      %30 = vector.broadcast %cst_21 : f32 to vector<1x128xf32>
      %c0_22 = arith.constant 0 : index
      %c0_23 = arith.constant 0 : index
      %31 = vector.load %arg8[%c0_22, %c0_23] : memref<1x128xf32, #tpu.memory_space<vmem>>, vector<1x128xf32>
      tpu.vector_store %arg8[%c0_22, %c0_23], %30 {strides = array<i32>} : memref<1x128xf32, #tpu.memory_space<vmem>>, vector<1x128xf32>,
      %cst_24 = arith.constant 0.000000e+00 : f32
      %32 = vector.broadcast %cst_24 : f32 to vector<17x128xf32>
      %c0_25 = arith.constant 0 : index
      %c0_26 = arith.constant 0 : index
      %33 = vector.load %arg9[%c0_25, %c0_26] : memref<17x128xf32, #tpu.memory_space<vmem>>, vector<17x128xf32>
      tpu.vector_store %arg9[%c0_25, %c0_26], %32 {strides = array<i32>} : memref<17x128xf32, #tpu.memory_space<vmem>>, vector<17x128xf32>,
    } else {
    }
    %c0 = arith.constant 0 : index
    %c0_1 = arith.constant 0 : index
    %c0_2 = arith.constant 0 : index
    %3 = vector.load %arg4[%c0, %c0_1, %c0_2] : memref<1x3x128xbf16, #tpu.memory_space<vmem>>, vector<1x3x128xbf16>
    %4 = vector.shape_cast %3 : vector<1x3x128xbf16> to vector<3x128xbf16>
    %c0_3 = arith.constant 0 : index
    %c0_4 = arith.constant 0 : index
    %c0_5 = arith.constant 0 : index
    %5 = vector.load %arg3[%c0_3, %c0_4, %c0_5] : memref<1x3x128xbf16, #tpu.memory_space<vmem>>, vector<1x3x128xbf16>
    %6 = vector.shape_cast %5 : vector<1x3x128xbf16> to vector<3x128xbf16>
    %cst = arith.constant dense<0.000000e+00> : vector<128x128xf32>
    %7 = tpu.matmul %4, %6, %cst {dimension_numbers = #tpu.dot_dimension_numbers<[0], [0], [1], [1], [0, 1, 1, 1], [], []>} : vector<3x128xbf16>, vector<3x128xbf16>, vector<128x128xf32> -> vector<128x128xf32>
    %c0_6 = arith.constant 0 : index
    %c0_7 = arith.constant 0 : index
    %8 = vector.load %arg8[%c0_6, %c0_7] : memref<1x128xf32, #tpu.memory_space<vmem>>, vector<1x128xf32>
    %cst_8 = arith.constant dense<0xFF800000> : vector<128xf32>
    %9 = vector.multi_reduction <maximumf>, %7, %cst_8 [0] : vector<128x128xf32> to vector<128xf32>
    %10 = vector.shape_cast %9 : vector<128xf32> to vector<1x128xf32>
    %11 = arith.maximumf %8, %10 : vector<1x128xf32>
    %12 = arith.subf %8, %11 : vector<1x128xf32>
    %13 = math.exp %12 : vector<1x128xf32>
    %14 = vector.broadcast %11 : vector<1x128xf32> to vector<128x128xf32>
    %15 = arith.subf %7, %14 : vector<128x128xf32>
    %16 = math.exp %15 : vector<128x128xf32>
    %17 = arith.truncf %16 : vector<128x128xf32> to vector<128x128xbf16>
    %c0_9 = arith.constant 0 : index
    %c0_10 = arith.constant 0 : index
    %18 = vector.load %arg9[%c0_9, %c0_10] : memref<17x128xf32, #tpu.memory_space<vmem>>, vector<17x128xf32>
    %19 = vector.broadcast %13 : vector<1x128xf32> to vector<17x128xf32>
    %20 = arith.mulf %19, %18 : vector<17x128xf32>
    %c0_11 = arith.constant 0 : index
    %c0_12 = arith.constant 0 : index
    %c0_13 = arith.constant 0 : index
    %21 = vector.load %arg5[%c0_11, %c0_12, %c0_13] : memref<1x17x128xbf16, #tpu.memory_space<vmem>>, vector<1x17x128xbf16>
    %22 = vector.shape_cast %21 : vector<1x17x128xbf16> to vector<17x128xbf16>
    %cst_14 = arith.constant dense<0.000000e+00> : vector<17x128xf32>
    %23 = tpu.matmul %22, %17, %cst_14 {dimension_numbers = #tpu.dot_dimension_numbers<[1], [0], [0], [1], [0, 0, 1, 1], [], []>} : vector<17x128xbf16>, vector<128x128xbf16>, vector<17x128xf32> -> vector<17x128xf32>
    %24 = arith.addf %20, %23 : vector<17x128xf32>
    %c0_15 = arith.constant 0 : index
    %c0_16 = arith.constant 0 : index
    %25 = vector.load %arg9[%c0_15, %c0_16] : memref<17x128xf32, #tpu.memory_space<vmem>>, vector<17x128xf32>
    tpu.vector_store %arg9[%c0_15, %c0_16], %24 {strides = array<i32>} : memref<17x128xf32, #tpu.memory_space<vmem>>, vector<17x128xf32>,
    %c0_17 = arith.constant 0 : index
    %c0_18 = arith.constant 0 : index
    %26 = vector.load %arg8[%c0_17, %c0_18] : memref<1x128xf32, #tpu.memory_space<vmem>>, vector<1x128xf32>
    tpu.vector_store %arg8[%c0_17, %c0_18], %11 {strides = array<i32>} : memref<1x128xf32, #tpu.memory_space<vmem>>, vector<1x128xf32>,
    %c0_i32_19 = arith.constant 0 : i32
    %27 = arith.cmpi eq, %arg2, %c0_i32_19 : i32
    %28 = arith.extui %27 : i1 to i32
    %c0_i32_20 = arith.constant 0 : i32
    %29 = arith.cmpi ne, %28, %c0_i32_20 : i32
    scf.if %29 {
      %c16 = arith.constant 16 : index
      %c0_21 = arith.constant 0 : index
      %30 = vector.load %arg9[%c16, %c0_21] : memref<17x128xf32, #tpu.memory_space<vmem>>, vector<1x128xf32>
      %31 = tpu.reciprocal %30 {approx = true} : vector<1x128xf32> -> vector<1x128xf32>
      %c0_22 = arith.constant 0 : index
      %c0_23 = arith.constant 0 : index
      %32 = vector.load %arg9[%c0_22, %c0_23] : memref<17x128xf32, #tpu.memory_space<vmem>>, vector<16x128xf32>
      %33 = vector.broadcast %31 : vector<1x128xf32> to vector<16x128xf32>
      %34 = arith.mulf %32, %33 : vector<16x128xf32>
      %c0_24 = arith.constant 0 : index
      %c0_25 = arith.constant 0 : index
      %c0_26 = arith.constant 0 : index
      %35 = vector.load %arg6[%c0_24, %c0_25, %c0_26] : memref<1x16x128xf32, #tpu.memory_space<vmem>>, vector<1x16x128xf32>
      %36 = vector.shape_cast %35 : vector<1x16x128xf32> to vector<16x128xf32>
      %37 = arith.addf %34, %36 : vector<16x128xf32>
      %c0_27 = arith.constant 0 : index
      %c0_28 = arith.constant 0 : index
      %c0_29 = arith.constant 0 : index
      %38 = vector.load %arg7[%c0_27, %c0_28, %c0_29] : memref<1x16x128xf32, #tpu.memory_space<vmem>>, vector<1x16x128xf32>
      %39 = vector.shape_cast %38 : vector<1x16x128xf32> to vector<16x128xf32>
      %40 = vector.shape_cast %37 : vector<16x128xf32> to vector<1x16x128xf32>
      tpu.vector_store %arg7[%c0_27, %c0_28, %c0_29], %40 {strides = array<i32>} : memref<1x16x128xf32, #tpu.memory_space<vmem>>, vector<1x16x128xf32>,
    } else {
    }
    return
  }
  func.func @transform_0(%arg0: i32, %arg1: i32, %arg2: i32) -> (i32, i32, i32) {
    %c0_i32 = arith.constant 0 : i32
    %c0_i32_0 = arith.constant 0 : i32
    return %arg0, %c0_i32, %arg1 : i32, i32, i32
  }
  func.func @transform_1(%arg0: i32, %arg1: i32, %arg2: i32) -> (i32, i32, i32) {
    %c0_i32 = arith.constant 0 : i32
    %c0_i32_0 = arith.constant 0 : i32
    return %arg0, %c0_i32, %arg2 : i32, i32, i32
  }
  func.func @transform_2(%arg0: i32, %arg1: i32, %arg2: i32) -> (i32, i32, i32) {
    %c0_i32 = arith.constant 0 : i32
    %c0_i32_0 = arith.constant 0 : i32
    return %arg0, %c0_i32, %arg2 : i32, i32, i32
  }
  func.func @transform_3(%arg0: i32, %arg1: i32, %arg2: i32) -> (i32, i32, i32) {
    %c0_i32 = arith.constant 0 : i32
    %c0_i32_0 = arith.constant 0 : i32
    return %arg0, %c0_i32, %arg1 : i32, i32, i32
  }
  func.func @transform_4(%arg0: i32, %arg1: i32, %arg2: i32) -> (i32, i32, i32) {
    %c0_i32 = arith.constant 0 : i32
    %c0_i32_0 = arith.constant 0 : i32
    return %arg0, %c0_i32, %arg1 : i32, i32, i32
  }
}

</mosaic_0001>

<llo_original>
// kernel: tpu_custom_call.1
$region0: #{tpu_custom_call.1}
  #allocation0 [shape = 'u32[]', space=smem, size = 0x4, offset = 0x4, fixed_abs, tag = 'smem constant byte address 0x4 - core index']
  #allocation1 [shape = 'u32[72,128]{1,0:T(1,128)}', space=vmem, size = 0x9000, scoped, tag = 'internal scratch']
  #allocation2 [shape = 'f32[1,128]{1,0:T(1,128)}', space=vmem, size = 0x200, scoped, tag = 'scratch operand']
  #allocation3 [shape = 'f32[17,128]{1,0:T(8,128)}', space=vmem, size = 0x3000, scoped, tag = 'scratch operand']
  %s0 = inlined_call_operand.vmem [shape: bf16[2,3,128], index: 0, kind: input, shape index: {}]
  %s1 = inlined_call_operand.vmem [shape: bf16[2,3,128], index: 1, kind: input, shape index: {}]
  %s2 = inlined_call_operand.vmem [shape: bf16[2,17,128], index: 2, kind: input, shape index: {}]
  %s3 = inlined_call_operand.vmem [shape: f32[2,16,128], index: 3, kind: input, shape index: {}]
  %s4 = inlined_call_operand.hbm [shape: f32[2,16,128], index: 4, kind: output, shape index: {}]
  %s5 = sld [smem:[#allocation0]]
  $region57: #{tpu_custom_call.1} parent=0
    _
  %s7 = ssub.s32 1, %s5
  %s8 = scalar_select 0, %s7, %s5
  $region1: #{tpu_custom_call.1} parent=0
    #allocation4 [shape = 'u8[16384]{0}', space=vmem, size = 0x4000, scoped, tag = 'output window, operand 0']
    #allocation5 [shape = 's32[2]{0}', space=sflag, size = 0x8, scoped, tag = 'scoped memory for tpu_custom_call.1']
    %9 = vsyncpa [#allocation5], 0
    %s10 = scalar_lea.sflag [#allocation5], 1
    %11 = vsyncpa %s10, 0
    loop: start=0, step=1, limit=4
    $region2: #{tpu_custom_call.1} parent=1 // loop_pre_header
      _
    $region3: #{tpu_custom_call.1} parent=1 // loop_header
      %s13 = sphi 0, %s17
      %p14 = scmp.ge.s32.totalorder %s13, 4
      %s20 = sphi 0, %s39
      %s21 = sphi 0, %s35
      %s22 = sphi 0, %s31
      %s23 = sphi 0, %s20
      %s24 = sphi 0, %s21
      %s25 = sphi 0, %s22
      %s26 = sphi 0, %s23
      %s27 = sphi 0, %s24
      %s28 = sphi 0, %s25
      %s44 = sphi 0, %s46
      %s47 = sphi 0, %s44
      %s48 = sphi 0, %s47
      %s64 = sphi 0, %s48
      %s72 = sphi 0, %s74
      %s75 = sphi 0, %s72
      %s76 = sphi 0, %s75
      %s92 = sphi 0, %s76
      %s100 = sphi 0, %s102
      %s103 = sphi 0, %s100
      %s104 = sphi 0, %s103
      %s120 = sphi 0, %s104
      %s128 = sphi 0, %s130
      %s131 = sphi 0, %s128
      %s132 = sphi 0, %s131
      %s148 = sphi 0, %s132
      %s156 = sphi 0, %s158
      %s159 = sphi 0, %s156
      %s160 = sphi 0, %s159
      %s176 = sphi 0, %s160
    $region4: #{tpu_custom_call.1} parent=1 // loop_header_branch
      %16 = sbr.rel (%p14) target = $region8
    $region5: #{tpu_custom_call.1} parent=1 // loop_body
      %s18 = ssub.s32 %s13, 1
      %s19 = ssub.s32 %s13, 2
      %s29 = sadd.s32 1, %s22
      %p30 = scmp.ge.s32.totalorder %s29, 1
      %s31 = scalar_select %p30, 0, %s29
      %s32 = sadd.s32 1, %s21
      %s33 = scalar_select %p30, %s32, %s21
      %p34 = scmp.ge.s32.totalorder %s33, 1
      %s35 = scalar_select %p34, 0, %s33
      %s36 = sadd.s32 1, %s20
      %s37 = scalar_select %p34, %s36, %s20
      %p38 = scmp.ge.s32.totalorder %s37, 2
      %s39 = scalar_select %p38, 0, %s37
      %s40 = ssub.s32 %s20, %s39
      %s41 = ssub.s32 %s21, %s35
      %s42 = sor.u32 %s40, %s41
      %p43 = scmp.eq.s32.totalorder %s42, 0
      %s45 = sadd.s32 %s44, 1
      %s46 = scalar_select %p43, %s44, %s45
      %p49 = pneg %p43
      %p50 = scmp.eq.s32.totalorder %s13, 1
      %p51 = por %p49, %p50
      %p52 = scmp.ne.s32.totalorder %s44, %s47
      %p53 = scmp.eq.s32.totalorder %s13, 0
      %p54 = por %p52, %p53
      %p55 = scmp.ne.s32.totalorder %s44, %s47
      %p56 = scmp.eq.s32.totalorder %s18, 1
      %p57 = por %p55, %p56
      %p58 = scmp.ne.s32.totalorder %s47, %s48
      %p59 = scmp.eq.s32.totalorder %s18, 0
      %p60 = por %p58, %p59
      %p61 = scmp.ne.s32.totalorder %s47, %s48
      %p62 = scmp.eq.s32.totalorder %s19, 1
      %p63 = por %p61, %p62
      %p65 = scmp.ne.s32.totalorder %s48, %s64
      %p66 = scmp.eq.s32.totalorder %s19, 0
      %p67 = por %p65, %p66
      %s68 = ssub.s32 %s20, %s39
      %s69 = ssub.s32 %s22, %s31
      %s70 = sor.u32 %s68, %s69
      %p71 = scmp.eq.s32.totalorder %s70, 0
      %s73 = sadd.s32 %s72, 1
      %s74 = scalar_select %p71, %s72, %s73
      %p77 = pneg %p71
      %p78 = scmp.eq.s32.totalorder %s13, 1
      %p79 = por %p77, %p78
      %p80 = scmp.ne.s32.totalorder %s72, %s75
      %p81 = scmp.eq.s32.totalorder %s13, 0
      %p82 = por %p80, %p81
      %p83 = scmp.ne.s32.totalorder %s72, %s75
      %p84 = scmp.eq.s32.totalorder %s18, 1
      %p85 = por %p83, %p84
      %p86 = scmp.ne.s32.totalorder %s75, %s76
      %p87 = scmp.eq.s32.totalorder %s18, 0
      %p88 = por %p86, %p87
      %p89 = scmp.ne.s32.totalorder %s75, %s76
      %p90 = scmp.eq.s32.totalorder %s19, 1
      %p91 = por %p89, %p90
      %p93 = scmp.ne.s32.totalorder %s76, %s92
      %p94 = scmp.eq.s32.totalorder %s19, 0
      %p95 = por %p93, %p94
      %s96 = ssub.s32 %s20, %s39
      %s97 = ssub.s32 %s22, %s31
      %s98 = sor.u32 %s96, %s97
      %p99 = scmp.eq.s32.totalorder %s98, 0
      %s101 = sadd.s32 %s100, 1
      %s102 = scalar_select %p99, %s100, %s101
      %p105 = pneg %p99
      %p106 = scmp.eq.s32.totalorder %s13, 1
      %p107 = por %p105, %p106
      %p108 = scmp.ne.s32.totalorder %s100, %s103
      %p109 = scmp.eq.s32.totalorder %s13, 0
      %p110 = por %p108, %p109
      %p111 = scmp.ne.s32.totalorder %s100, %s103
      %p112 = scmp.eq.s32.totalorder %s18, 1
      %p113 = por %p111, %p112
      %p114 = scmp.ne.s32.totalorder %s103, %s104
      %p115 = scmp.eq.s32.totalorder %s18, 0
      %p116 = por %p114, %p115
      %p117 = scmp.ne.s32.totalorder %s103, %s104
      %p118 = scmp.eq.s32.totalorder %s19, 1
      %p119 = por %p117, %p118
      %p121 = scmp.ne.s32.totalorder %s104, %s120
      %p122 = scmp.eq.s32.totalorder %s19, 0
      %p123 = por %p121, %p122
      %s124 = ssub.s32 %s20, %s39
      %s125 = ssub.s32 %s21, %s35
      %s126 = sor.u32 %s124, %s125
      %p127 = scmp.eq.s32.totalorder %s126, 0
      %s129 = sadd.s32 %s128, 1
      %s130 = scalar_select %p127, %s128, %s129
      %p133 = pneg %p127
      %p134 = scmp.eq.s32.totalorder %s13, 1
      %p135 = por %p133, %p134
      %p136 = scmp.ne.s32.totalorder %s128, %s131
      %p137 = scmp.eq.s32.totalorder %s13, 0
      %p138 = por %p136, %p137
      %p139 = scmp.ne.s32.totalorder %s128, %s131
      %p140 = scmp.eq.s32.totalorder %s18, 1
      %p141 = por %p139, %p140
      %p142 = scmp.ne.s32.totalorder %s131, %s132
      %p143 = scmp.eq.s32.totalorder %s18, 0
      %p144 = por %p142, %p143
      %p145 = scmp.ne.s32.totalorder %s131, %s132
      %p146 = scmp.eq.s32.totalorder %s19, 1
      %p147 = por %p145, %p146
      %p149 = scmp.ne.s32.totalorder %s132, %s148
      %p150 = scmp.eq.s32.totalorder %s19, 0
      %p151 = por %p149, %p150
      %s152 = ssub.s32 %s20, %s39
      %s153 = ssub.s32 %s21, %s35
      %s154 = sor.u32 %s152, %s153
      %p155 = scmp.eq.s32.totalorder %s154, 0
      %s157 = sadd.s32 %s156, 1
      %s158 = scalar_select %p155, %s156, %s157
      %p161 = pneg %p155
      %p162 = scmp.eq.s32.totalorder %s13, 1
      %p163 = por %p161, %p162
      %p164 = scmp.ne.s32.totalorder %s156, %s159
      %p165 = scmp.eq.s32.totalorder %s13, 0
      %p166 = por %p164, %p165
      %p167 = scmp.ne.s32.totalorder %s156, %s159
      %p168 = scmp.eq.s32.totalorder %s18, 1
      %p169 = por %p167, %p168
      %p170 = scmp.ne.s32.totalorder %s159, %s160
      %p171 = scmp.eq.s32.totalorder %s18, 0
      %p172 = por %p170, %p171
      %p173 = scmp.ne.s32.totalorder %s159, %s160
      %p174 = scmp.eq.s32.totalorder %s19, 1
      %p175 = por %p173, %p174
      %p177 = scmp.ne.s32.totalorder %s160, %s176
      %p178 = scmp.eq.s32.totalorder %s19, 0
      %p179 = por %p177, %p178
      %p180 = scmp.le.s32.totalorder 1, %s13
      %p181 = scmp.lt.s32.totalorder %s13, 3
      %p182 = pnand %p180, %p181
      %p183 = pneg %p182
      // Predicated region
      $region9: #{tpu_custom_call.1} parent=5 // pred_check
        _
      $region10: #{tpu_custom_call.1} parent=5 // pred_check_branch
        %185 = sbr.rel (%p182) target = $region12
      $region11: #{tpu_custom_call.1} parent=5 // pred_region
        %s186 = ssub.s32 %s13, 1
      $region12: #{tpu_custom_call.1} parent=5 // pred_fallthru
        _
      %p187 = scmp.lt.s32.totalorder %s13, 2
      // Predicated region
      $region13: #{tpu_custom_call.1} parent=5 // pred_check
        %p188 = pneg %p187
      $region14: #{tpu_custom_call.1} parent=5 // pred_check_branch
        %190 = sbr.rel (%p188) target = $region16
      $region15: #{tpu_custom_call.1} parent=5 // pred_region
        // Predicated region
        $region17: #{tpu_custom_call.1} parent=15 // pred_check
          %p191 = pneg %p54
        $region18: #{tpu_custom_call.1} parent=15 // pred_check_branch
          %193 = sbr.rel (%p191) target = $region20
        $region19: #{tpu_custom_call.1} parent=15 // pred_region
          %p194 = scmp.lt.s32.totalorder %s20, 1
          %s195 = scalar_select %p194, %s20, 1
          %p196 = scmp.lt.s32.totalorder %s21, 0
          %s197 = scalar_select %p196, %s21, 0
          %s198 = sadd.s32 %s197, %s195
          %s199 = smul.addr %s198, 2
          %s200 = scalar_lea.vmem %s0, %s199
        $region20: #{tpu_custom_call.1} parent=15 // pred_fallthru
          _
        // Predicated region
        $region21: #{tpu_custom_call.1} parent=15 // pred_check
          %p201 = pneg %p82
        $region22: #{tpu_custom_call.1} parent=15 // pred_check_branch
          %203 = sbr.rel (%p201) target = $region24
        $region23: #{tpu_custom_call.1} parent=15 // pred_region
          %p204 = scmp.lt.s32.totalorder %s20, 1
          %s205 = scalar_select %p204, %s20, 1
          %p206 = scmp.lt.s32.totalorder %s22, 0
          %s207 = scalar_select %p206, %s22, 0
          %s208 = sadd.s32 %s207, %s205
          %s209 = smul.addr %s208, 2
          %s210 = scalar_lea.vmem %s1, %s209
        $region24: #{tpu_custom_call.1} parent=15 // pred_fallthru
          _
        // Predicated region
        $region25: #{tpu_custom_call.1} parent=15 // pred_check
          %p211 = pneg %p110
        $region26: #{tpu_custom_call.1} parent=15 // pred_check_branch
          %213 = sbr.rel (%p211) target = $region28
        $region27: #{tpu_custom_call.1} parent=15 // pred_region
          %p214 = scmp.lt.s32.totalorder %s20, 1
          %s215 = scalar_select %p214, %s20, 1
          %p216 = scmp.lt.s32.totalorder %s22, 0
          %s217 = scalar_select %p216, %s22, 0
          %s218 = smul.addr %s215, 3
          %s219 = sadd.s32 %s217, %s218
          %s220 = smul.addr %s219, 4
          %s221 = scalar_lea.vmem %s2, %s220
        $region28: #{tpu_custom_call.1} parent=15 // pred_fallthru
          _
        // Predicated region
        $region29: #{tpu_custom_call.1} parent=15 // pred_check
          %p222 = pneg %p138
        $region30: #{tpu_custom_call.1} parent=15 // pred_check_branch
          %224 = sbr.rel (%p222) target = $region32
        $region31: #{tpu_custom_call.1} parent=15 // pred_region
          %p225 = scmp.lt.s32.totalorder %s20, 1
          %s226 = scalar_select %p225, %s20, 1
          %p227 = scmp.lt.s32.totalorder %s21, 0
          %s228 = scalar_select %p227, %s21, 0
          %s229 = smul.addr %s226, 2
          %s230 = sadd.s32 %s228, %s229
          %s231 = smul.addr %s230, 8
          %s232 = scalar_lea.vmem %s3, %s231
        $region32: #{tpu_custom_call.1} parent=15 // pred_fallthru
          _
      $region16: #{tpu_custom_call.1} parent=5 // pred_fallthru
        _
      %p233 = scmp.le.s32.totalorder 1, %s13
      %p234 = scmp.lt.s32.totalorder %s13, 3
      %p235 = pnand %p233, %p234
      %p236 = pneg %p235
      // Predicated region
      $region33: #{tpu_custom_call.1} parent=5 // pred_check
        _
      $region34: #{tpu_custom_call.1} parent=5 // pred_check_branch
        %238 = sbr.rel (%p235) target = $region36
      $region35: #{tpu_custom_call.1} parent=5 // pred_region
        %s239 = ssub.s32 %s13, 1
        %p240 = scmp.lt.s32.totalorder %s23, 1
        %s241 = scalar_select %p240, %s23, 1
        %p242 = scmp.lt.s32.totalorder %s24, 0
        %s243 = scalar_select %p242, %s24, 0
        %s244 = sadd.s32 %s243, %s241
        %s245 = smul.addr %s244, 2
        %s246 = scalar_lea.vmem %s0, %s245
        %p247 = pneg %p60
        %p248 = pneg %p57
        %p249 = scmp.lt.s32.totalorder %s23, 1
        %s250 = scalar_select %p249, %s23, 1
        %p251 = scmp.lt.s32.totalorder %s25, 0
        %s252 = scalar_select %p251, %s25, 0
        %s253 = sadd.s32 %s252, %s250
        %s254 = smul.addr %s253, 2
        %s255 = scalar_lea.vmem %s1, %s254
        %p256 = pneg %p88
        %p257 = pneg %p85
        %p258 = scmp.lt.s32.totalorder %s23, 1
        %s259 = scalar_select %p258, %s23, 1
        %p260 = scmp.lt.s32.totalorder %s25, 0
        %s261 = scalar_select %p260, %s25, 0
        %s262 = smul.addr %s259, 3
        %s263 = sadd.s32 %s261, %s262
        %s264 = smul.addr %s263, 4
        %s265 = scalar_lea.vmem %s2, %s264
        %p266 = pneg %p116
        %p267 = pneg %p113
        %p268 = scmp.lt.s32.totalorder %s23, 1
        %s269 = scalar_select %p268, %s23, 1
        %p270 = scmp.lt.s32.totalorder %s24, 0
        %s271 = scalar_select %p270, %s24, 0
        %s272 = smul.addr %s269, 2
        %s273 = sadd.s32 %s271, %s272
        %s274 = smul.addr %s273, 8
        %s275 = scalar_lea.vmem %s3, %s274
        %p276 = pneg %p144
        %p277 = pneg %p141
        %p278 = pneg %p172
        %p279 = pneg %p169
        %s280 = sand.u32 %s159, 1
        %s281 = scalar_lea.sflag [#allocation5], %s280
        %s282 = sand.u32 %s159, 1
        %s283 = smul.addr %s282, 16
        %s284 = scalar_lea.vmem [#allocation4], %s283
        %p285 = scmp.lt.s32.totalorder %s23, 1
        %s286 = scalar_select %p285, %s23, 1
        %p287 = scmp.lt.s32.totalorder %s24, 0
        %s288 = scalar_select %p287, %s24, 0
        %s289 = sadd.s32 %s288, %s286
        %s290 = smul.addr %s289, 2
        %s291 = scalar_lea.vmem %s0, %s290
        %p292 = scmp.lt.s32.totalorder %s23, 1
        %s293 = scalar_select %p292, %s23, 1
        %p294 = scmp.lt.s32.totalorder %s25, 0
        %s295 = scalar_select %p294, %s25, 0
        %s296 = sadd.s32 %s295, %s293
        %s297 = smul.addr %s296, 2
        %s298 = scalar_lea.vmem %s1, %s297
        %p299 = scmp.lt.s32.totalorder %s23, 1
        %s300 = scalar_select %p299, %s23, 1
        %p301 = scmp.lt.s32.totalorder %s25, 0
        %s302 = scalar_select %p301, %s25, 0
        %s303 = smul.addr %s300, 3
        %s304 = sadd.s32 %s302, %s303
        %s305 = smul.addr %s304, 4
        %s306 = scalar_lea.vmem %s2, %s305
        %p307 = scmp.lt.s32.totalorder %s23, 1
        %s308 = scalar_select %p307, %s23, 1
        %p309 = scmp.lt.s32.totalorder %s24, 0
        %s310 = scalar_select %p309, %s24, 0
        %s311 = smul.addr %s308, 2
        %s312 = sadd.s32 %s310, %s311
        %s313 = smul.addr %s312, 8
        %s314 = scalar_lea.vmem %s3, %s313
        %p316 = scmp.eq.s32.totalorder %s25, 0
        // Predicated region
        $region37: #{tpu_custom_call.1} parent=35 // pred_check
          %p317 = pneg %p316
        $region38: #{tpu_custom_call.1} parent=35 // pred_check_branch
          %319 = sbr.rel (%p317) target = $region40
        $region39: #{tpu_custom_call.1} parent=35 // pred_region
          %320 = vst [vmem:[#allocation2] sm:$0x1] -inf
          %321 = vst [vmem:[#allocation3] sm:$0xff] 0.0
          %322 = vst [vmem:[#allocation3 + $0x8] sm:$0xff] 0.0
          %323 = vst [vmem:[#allocation3 + $0x10] sm:$0x1] 0.0
        $region40: #{tpu_custom_call.1} parent=35 // pred_fallthru
          _
        %v324 = vld [vmem:[%s298] sm:$0x3]
        %v325 = vld [vmem:[%s291] sm:$0x3]
        %326 = vxpose.xlu0.c.b16.start [1/8] %v324, 128
        %327 = vxpose.xlu0.c.b16.cont [2/8] 0, 128
        %328 = vxpose.xlu0.c.b16.cont [3/8] 0, 128
        %329 = vxpose.xlu0.c.b16.cont [4/8] 0, 128
        %330 = vxpose.xlu0.c.b16.cont [5/8] 0, 128
        %331 = vxpose.xlu0.c.b16.cont [6/8] 0, 128
        %332 = vxpose.xlu0.c.b16.cont [7/8] 0, 128
        %333 = vxpose.xlu0.c.b16.end [8/8] 0, 128
        %v334 = vpop.trf.xlu0
        %v335 = vpop.trf.xlu0
        %v336 = vpop.trf.xlu0
        %v337 = vpop.trf.xlu0
        %v338 = vpop.trf.xlu0
        %v339 = vpop.trf.xlu0
        %v340 = vpop.trf.xlu0
        %v341 = vpop.trf.xlu0
        %vm342 = vcmask 23552
        %v344 = vsel %vm342, %v334, 0
        %v347 = vsel %vm342, %v335, 0
        %v350 = vsel %vm342, %v336, 0
        %v353 = vsel %vm342, %v337, 0
        %v356 = vsel %vm342, %v338, 0
        %v359 = vsel %vm342, %v339, 0
        %v362 = vsel %vm342, %v340, 0
        %v365 = vsel %vm342, %v341, 0
        %vm367 = vcmask 1040384
        %vm368 = vcmask 1041408
        %v369 = vsel %vm367, 4294967295, 65535
        %v370 = vsel %vm368, %v369, 0
        %v372 = vand.u32 %v325, %v370
        %374 = vmatpush.bf16.msra.mxu0 0
        %375 = vmatpush.bf16.msra.mxu0 0
        %376 = vmatpush.bf16.msra.mxu0 0
        %377 = vmatpush.bf16.msra.mxu0 0
        %378 = vmatpush.bf16.msra.mxu0 0
        %379 = vmatpush.bf16.msra.mxu0 0
        %380 = vmatpush.bf16.msra.mxu0 0
        %381 = vmatpush.bf16.msra.mxu0 %v372
        %382 = vmatmul.bf16.gmra.mxu0 %v344
        %v383 = vpop.f32.mrf.mxu0
        %v384 = vadd.f32 0.0, %v383
        %v385 = vpop.f32.mrf.mxu0
        %v386 = vadd.f32 0.0, %v385
        %387 = vmatmul.bf16.gmra.mxu0 %v347
        %v388 = vpop.f32.mrf.mxu0
        %v389 = vadd.f32 0.0, %v388
        %v390 = vpop.f32.mrf.mxu0
        %v391 = vadd.f32 0.0, %v390
        %392 = vmatmul.bf16.gmra.mxu0 %v350
        %v393 = vpop.f32.mrf.mxu0
        %v394 = vadd.f32 0.0, %v393
        %v395 = vpop.f32.mrf.mxu0
        %v396 = vadd.f32 0.0, %v395
        %397 = vmatmul.bf16.gmra.mxu0 %v353
        %v398 = vpop.f32.mrf.mxu0
        %v399 = vadd.f32 0.0, %v398
        %v400 = vpop.f32.mrf.mxu0
        %v401 = vadd.f32 0.0, %v400
        %402 = vmatmul.bf16.gmra.mxu0 %v356
        %v403 = vpop.f32.mrf.mxu0
        %v404 = vadd.f32 0.0, %v403
        %v405 = vpop.f32.mrf.mxu0
        %v406 = vadd.f32 0.0, %v405
        %407 = vmatmul.bf16.gmra.mxu0 %v359
        %v408 = vpop.f32.mrf.mxu0
        %v409 = vadd.f32 0.0, %v408
        %v410 = vpop.f32.mrf.mxu0
        %v411 = vadd.f32 0.0, %v410
        %412 = vmatmul.bf16.gmra.mxu0 %v362
        %v413 = vpop.f32.mrf.mxu0
        %v414 = vadd.f32 0.0, %v413
        %v415 = vpop.f32.mrf.mxu0
        %v416 = vadd.f32 0.0, %v415
        %417 = vmatmul.bf16.gmra.mxu0 %v365
        %v418 = vpop.f32.mrf.mxu0
        %v419 = vadd.f32 0.0, %v418
        %v420 = vpop.f32.mrf.mxu0
        %v421 = vadd.f32 0.0, %v420
        %422 = vdwg.mxu0
        %v423 = vld [vmem:[#allocation2] sm:$0x1]
        %v424 = vmax.f32 %v384, %v394
        %v425 = vmax.f32 %v386, %v396
        %v426 = vmax.f32 %v389, %v399
        %v427 = vmax.f32 %v391, %v401
        %v428 = vmax.f32 %v424, %v404
        %v429 = vmax.f32 %v425, %v406
        %v430 = vmax.f32 %v426, %v409
        %v431 = vmax.f32 %v427, %v411
        %v432 = vmax.f32 %v428, %v414
        %v433 = vmax.f32 %v429, %v416
        %v434 = vmax.f32 %v430, %v419
        %v435 = vmax.f32 %v431, %v421
        %v436 = vmax.f32 %v432, %v433
        %v437 = vmax.f32 %v434, %v435
        %v438 = vmax.f32 %v436, %v437
        %v439 = vrot.slane %v438, 4
        %v440 = vmax.f32 %v438, %v439
        %v441 = vrot.slane %v440, 2
        %v442 = vmax.f32 %v440, %v441
        %v443 = vrot.slane %v442, 1
        %v444 = vmax.f32 %v442, %v443
        %v445 = vmax.f32 %v423, %v444
        %v446 = vsub.f32 %v423, %v445
        %v447 = vmul.f32 %v446, 1.442695
        %v448 = vpow.pop %v447
        %v450 = vperm.slane %v445, 0
        %v452 = vsub.f32 %v384, %v450
        %v453 = vsub.f32 %v386, %v450
        %v454 = vsub.f32 %v389, %v450
        %v455 = vsub.f32 %v391, %v450
        %v456 = vsub.f32 %v394, %v450
        %v457 = vsub.f32 %v396, %v450
        %v458 = vsub.f32 %v399, %v450
        %v459 = vsub.f32 %v401, %v450
        %v460 = vsub.f32 %v404, %v450
        %v461 = vsub.f32 %v406, %v450
        %v462 = vsub.f32 %v409, %v450
        %v463 = vsub.f32 %v411, %v450
        %v464 = vsub.f32 %v414, %v450
        %v465 = vsub.f32 %v416, %v450
        %v466 = vsub.f32 %v419, %v450
        %v467 = vsub.f32 %v421, %v450
        %v468 = vmul.f32 %v452, 1.442695
        %v469 = vpow.pop %v468
        %v470 = vmul.f32 %v453, 1.442695
        %v471 = vpow.pop %v470
        %v472 = vmul.f32 %v454, 1.442695
        %v473 = vpow.pop %v472
        %v474 = vmul.f32 %v455, 1.442695
        %v475 = vpow.pop %v474
        %v476 = vmul.f32 %v456, 1.442695
        %v477 = vpow.pop %v476
        %v478 = vmul.f32 %v457, 1.442695
        %v479 = vpow.pop %v478
        %v480 = vmul.f32 %v458, 1.442695
        %v481 = vpow.pop %v480
        %v482 = vmul.f32 %v459, 1.442695
        %v483 = vpow.pop %v482
        %v484 = vmul.f32 %v460, 1.442695
        %v485 = vpow.pop %v484
        %v486 = vmul.f32 %v461, 1.442695
        %v487 = vpow.pop %v486
        %v488 = vmul.f32 %v462, 1.442695
        %v489 = vpow.pop %v488
        %v490 = vmul.f32 %v463, 1.442695
        %v491 = vpow.pop %v490
        %v492 = vmul.f32 %v464, 1.442695
        %v493 = vpow.pop %v492
        %v494 = vmul.f32 %v465, 1.442695
        %v495 = vpow.pop %v494
        %v496 = vmul.f32 %v466, 1.442695
        %v497 = vpow.pop %v496
        %v498 = vmul.f32 %v467, 1.442695
        %v499 = vpow.pop %v498
        %v500 = vpack.c.bf16 %v471, %v469
        %v501 = vpack.c.bf16 %v475, %v473
        %v502 = vpack.c.bf16 %v479, %v477
        %v503 = vpack.c.bf16 %v483, %v481
        %v504 = vpack.c.bf16 %v487, %v485
        %v505 = vpack.c.bf16 %v491, %v489
        %v506 = vpack.c.bf16 %v495, %v493
        %v507 = vpack.c.bf16 %v499, %v497
        %v508 = vld [vmem:[#allocation3] sm:$0xff]
        %v509 = vld [vmem:[#allocation3 + $0x8] sm:$0xff]
        %v510 = vld [vmem:[#allocation3 + $0x10] sm:$0x1]
        %v512 = vperm.slane %v448, 0
        %v514 = vmul.f32 %v512, %v508
        %v515 = vmul.f32 %v512, %v509
        %v516 = vmul.f32 %v512, %v510
        %v517 = vld [vmem:[%s306] sm:$0xf]
        %v518 = vld [vmem:[%s306 + $0x4] sm:$0xf]
        %v519 = vld [vmem:[%s306 + $0x8] sm:$0x1]
        %v523 = vunpack.c.l.b16 %v517
        %v524 = vunpack.c.l.b16 %v518
        %v525 = vunpack.c.l.b16 %v519
        %v526 = vpack.c.b16 %v524, %v523
        %v527 = vpack.c.b16 %v525, %v525
        %530 = vmatpush.bf16.msra.mxu0 %v507
        %531 = vmatpush.bf16.msra.mxu0 %v506
        %532 = vmatpush.bf16.msra.mxu0 %v505
        %533 = vmatpush.bf16.msra.mxu0 %v504
        %534 = vmatpush.bf16.msra.mxu0 %v503
        %535 = vmatpush.bf16.msra.mxu0 %v502
        %536 = vmatpush.bf16.msra.mxu0 %v501
        %537 = vmatpush.bf16.msra.mxu0 %v500
        %538 = vmatmul.bf16.gmra.mxu0 %v526
        %v539 = vpop.f32.mrf.mxu0
        %v540 = vadd.f32 0.0, %v539
        %v541 = vpop.f32.mrf.mxu0
        %v542 = vadd.f32 0.0, %v541
        %543 = vmatmul.bf16.gmra.mxu0 %v527
        %v544 = vpop.f32.mrf.mxu0
        %v545 = vadd.f32 0.0, %v544
        %v546 = vpop.f32.mrf.mxu0
        %547 = vdwg.mxu0
        %v548 = vadd.f32 %v514, %v540
        %v549 = vadd.f32 %v515, %v542
        %v550 = vadd.f32 %v516, %v545
        %551 = vst [vmem:[#allocation3] sm:$0xff] %v548
        %552 = vst [vmem:[#allocation3 + $0x8] sm:$0xff] %v549
        %553 = vst [vmem:[#allocation3 + $0x10] sm:$0x1] %v550
        %554 = vst [vmem:[#allocation2] sm:$0x1] %v445
        // Predicated region
        $region41: #{tpu_custom_call.1} parent=35 // pred_check
          %p555 = pneg %p316
        $region42: #{tpu_custom_call.1} parent=35 // pred_check_branch
          %557 = sbr.rel (%p555) target = $region44
        $region43: #{tpu_custom_call.1} parent=35 // pred_region
          %v558 = vld [vmem:[#allocation3 + $0x10] sm:$0x1]
          %v559 = vrcp.pop %v558
          %v560 = vld [vmem:[#allocation3] sm:$0xff]
          %v561 = vld [vmem:[#allocation3 + $0x8] sm:$0xff]
          %v562 = vperm.slane %v559, 0
          %v563 = vmul.f32 %v560, %v562
          %v564 = vmul.f32 %v561, %v562
          %v565 = vld [vmem:[%s314] sm:$0xff]
          %v566 = vld [vmem:[%s314 + $0x8] sm:$0xff]
          %v567 = vadd.f32 %v563, %v565
          %v568 = vadd.f32 %v564, %v566
          %569 = vst [vmem:[%s284] sm:$0xff] %v567
          %570 = vst [vmem:[%s284 + $0x8] sm:$0xff] %v568
        $region44: #{tpu_custom_call.1} parent=35 // pred_fallthru
          _
        %s571 = sand.u32 %s159, 1
        %s572 = scalar_lea.sflag [#allocation5], %s571
        %s573 = sand.u32 %s159, 1
        %s574 = smul.addr %s573, 16
        %s575 = scalar_lea.vmem [#allocation4], %s574
        // Predicated region
        $region45: #{tpu_custom_call.1} parent=35 // pred_check
          %p576 = pneg %p169
        $region46: #{tpu_custom_call.1} parent=35 // pred_check_branch
          %578 = sbr.rel (%p576) target = $region48
        $region47: #{tpu_custom_call.1} parent=35 // pred_region
          %580 = vsyncadd %s572, 0
          %s581 = smul.addr %s23, 2
          %s582 = sadd.s32 %s24, %s581
          %s583 = smul.addr %s582, 8
          %s584 = scalar_lea.hbm %s4, %s583
          %s585 = sshll.u32 %s575, 4
          %s586 = int_to_ptr.vmem [resolvable:$true] %s585
          %s587 = sshll.u32 %s584, 4
          %s588 = int_to_ptr.hbm [resolvable:$true] %s587
          %593 = dma.vmem_to_hbm [thread:$0]  %s586, 256, %s588, %s572, 128, 128, 8
        $region48: #{tpu_custom_call.1} parent=35 // pred_fallthru
          _
      $region36: #{tpu_custom_call.1} parent=5 // pred_fallthru
        _
      %p594 = scmp.le.s32.totalorder 2, %s13
      // Predicated region
      $region49: #{tpu_custom_call.1} parent=5 // pred_check
        %p595 = pneg %p594
      $region50: #{tpu_custom_call.1} parent=5 // pred_check_branch
        %597 = sbr.rel (%p595) target = $region52
      $region51: #{tpu_custom_call.1} parent=5 // pred_region
        %s598 = ssub.s32 %s13, 2
        // Predicated region
        $region53: #{tpu_custom_call.1} parent=51 // pred_check
          %p599 = pneg %p175
        $region54: #{tpu_custom_call.1} parent=51 // pred_check_branch
          %601 = sbr.rel (%p599) target = $region56
        $region55: #{tpu_custom_call.1} parent=51 // pred_region
          %s602 = sand.u32 %s160, 1
          %s603 = scalar_lea.sflag [#allocation5], %s602
          %s604 = sand.u32 %s160, 1
          %s605 = smul.addr %s604, 16
          %s606 = scalar_lea.vmem [#allocation4], %s605
          %608 = dma.done %s603, 256
        $region56: #{tpu_custom_call.1} parent=51 // pred_fallthru
          _
      $region52: #{tpu_custom_call.1} parent=5 // pred_fallthru
        _
    $region6: #{tpu_custom_call.1} parent=1 // loop_footer
      %s17 = sadd.s32 1, %s13
    $region7: #{tpu_custom_call.1} parent=1 // loop_footer_branch
      %12 = sbr.rel target = $region3
    $region8: #{tpu_custom_call.1} parent=1 // loop_exit
      _
    %609 = vsyncpa [#allocation5], 1
    %s610 = scalar_lea.sflag [#allocation5], 1
    %611 = vsyncpa %s610, 1

</llo_original>
